<compile_context>
chip_gen: v6e
topology: v6e:2x2x1
jax: 0.10.0
libtpu: 0.0.40
codegen_flags: <defaults>
</compile_context>

<pallas_src>
import jax
import jax.numpy as jnp
from jax.experimental import pallas as pl
from jax.experimental.pallas import tpu as pltpu


# --------------------------------------------------------------------------- kernel

def _input_layer_kernel(x_ref, stat_ref, w1_ref, b1_ref, w2_ref, o_ref):
    """Dynamics FC (Linear -> tanh -> Linear) + fused statics/bias add for one row tile.

    x_ref    : (row_tile, F_dyn)      time-major rows (row = t*batch + b)
    stat_ref : (batch, cols_store)    per-batch-row constant:
                                        cols [:Hd]  = b2_dyn (broadcast)
                                        cols [Hd:]  = statics embedding + b2_stat
    w2_ref   : (H1d, cols_store)      dyn output weights zero-padded into shared slot
    o_ref    : (row_tile, cols_store)
    """
    rows = x_ref.shape[0]
    nb = stat_ref.shape[0]
    f32 = jnp.float32

    h = jnp.tanh(
        jnp.dot(x_ref[...], w1_ref[...], preferred_element_type=f32) + b1_ref[...]
    )
    y = jnp.dot(h, w2_ref[...], preferred_element_type=f32)

    stat = stat_ref[...]
    if nb == 1:
        y = y + stat                                        # plain broadcast add
    elif rows % nb == 0 and nb % 8 == 0:
        # Tile-preserving split of the sublane axis (batch % 8 == 0): no relayout,
        # no materialized replica — just a broadcast add over the leading dim.
        reps = rows // nb
        y = (y.reshape(reps, nb, y.shape[-1]) + stat[None, :, :]).reshape(
            rows, y.shape[-1]
        )
    else:
        # TODO(synk): unaligned batch falls back to a materialized broadcast
        # (Mosaic cross-sublane relayout); pad batch to a multiple of 8 upstream.
        reps = rows // nb
        y = y + jnp.broadcast_to(
            stat[None, :, :], (reps, nb, stat.shape[-1])
        ).reshape(rows, stat.shape[-1])

    o_ref[...] = y.astype(o_ref.dtype)


# ------------------------------------------------------------------- sizing helpers

def _lane_pad(n):
    return ((int(n) + 127) // 128) * 128


def _const_buf_bytes(shape, buffers=2):
    """Padded f32 VMEM bytes for a small constant block (sublane->8, lane->128)."""
    rows = shape[0] if len(shape) >= 2 else 1
    cols = shape[-1]
    return buffers * 4 * (((rows + 7) // 8) * 8) * _lane_pad(cols)


def _tpu_vmem_and_cores():
    """Per-core VMEM capacity and TensorCore count (defensive, with fallbacks)."""
    vmem = 64 * 2**20          # conservative fallback (v7x per-core VMEM)
    cores = 1
    try:
        info = pltpu.get_tpu_info()
        vmem = int(getattr(info, "vmem_capacity_bytes", vmem))
    except Exception:
        pass
    try:
        kind = jax.devices()[0].device_kind.lower()
        if "v7" in kind:       # v7x: 2 TensorCores per chip
            cores = 2
    except Exception:
        pass
    return vmem, cores


def _pick_seq_tile(seq, batch, stream_bytes_per_row, vmem_budget_bytes, num_cores):
    """Largest seq tile (divisor of seq) whose padded row block fits the budget.

    Row tiles smaller than the full sequence need batch*tile % 8 == 0 (sublane
    alignment).  On single-TC chips we never force extra grid steps; on multi-TC
    chips we only split when each core still gets >=2 reasonably sized steps.
    """
    max_rows = max(batch, vmem_budget_bytes // max(stream_bytes_per_row, 1))
    divisors = [d for d in range(1, seq + 1) if seq % d == 0]
    legal = [d for d in divisors if d == seq or (batch * d) % 8 == 0] or [seq]
    fitting = [d for d in legal if batch * d <= max_rows] or [min(legal)]
    tile = max(fitting)

    if num_cores > 1:
        min_rows_per_step = 512          # keep per-step useful DMA non-trivial
        cand = [
            d for d in fitting
            if seq // d >= 2 * num_cores
            and (seq // d) % num_cores == 0
            and batch * d >= min_rows_per_step
        ]
        if cand:
            tile = max(cand)
    return tile


def _const_spec(shape):
    """Full-array BlockSpec for a grid-invariant input; single-buffered if supported."""
    idx = lambda i: (0,) * len(shape)
    try:
        return pl.BlockSpec(shape, idx, pipeline_mode=pl.Buffered(1))
    except Exception:
        return pl.BlockSpec(shape, idx)


# ------------------------------------------------------------------------- wrapper

def input_layer_forward(x_d, x_s, params, concatenate_output=True, seq_tile=None,
                        out_dtype=None, lane_pad_output=None):
    """Pallas-backed equivalent of InputLayer.forward (fc embeddings for both inputs).

    x_d: (batch, seq, F_dyn), x_s: (batch, F_stat)
    params["dyn"]/["stat"]: (w1, b1, w2, b2) of the 2-layer FC embedding nets.
    Returns (seq, batch, Hd+Hs) if concatenate_output else ((seq, batch, Hd), (batch, Hs)).
    """
    # TODO(synk): autoregressive-input slicing and the x_one_hot / no-statics paths
    # are not exercised here (num_autoregression_inputs = 0, statics always present).
    batch, seq, fdyn = x_d.shape
    w1d, b1d, w2d, b2d = params["dyn"]
    w1s, b1s, w2s, b2s = params["stat"]
    h1d = w1d.shape[1]
    hd = w2d.shape[1]
    hs = w2s.shape[1]
    out_dtype = x_d.dtype if out_dtype is None else out_dtype

    # Statics embedding hoisted to XLA (tiny (batch, F_stat) net, grid-invariant).
    y_s = jnp.tanh(x_s @ w1s + b1s) @ w2s + b2s                       # (batch, Hs)

    if concatenate_output:
        cols = hd + hs
        # Per-batch-row constant: dyn output bias in the dyn columns, statics
        # embedding (bias already included) in the stat columns.  The in-kernel
        # "concat" is then exact: zero-padded w2d contributes 0 to the stat columns.
        stat_const = jnp.concatenate(
            [jnp.broadcast_to(b2d, (batch, hd)), y_s], axis=-1)       # (batch, Hd+Hs)
        w2_fused = jnp.pad(w2d, ((0, 0), (0, hs)))
    else:
        cols = hd
        stat_const = jnp.broadcast_to(b2d, (batch, hd))
        w2_fused = w2d

    # Lane-dense output option: round the stored width up to a multiple of 128 so
    # every row store is an unmasked vst.  Auto-enabled only when the padding
    # overhead is <= 12.5% (for narrow outputs the extra HBM writeback + the XLA
    # slice back to `cols` would cost more than the masked stores it removes).
    cols_pad = _lane_pad(cols)
    if lane_pad_output is None:
        lane_pad_output = (cols_pad > cols) and (cols_pad * 8 <= cols * 9)
    cols_store = cols_pad if lane_pad_output else cols
    if cols_store > cols:
        w2_fused = jnp.pad(w2_fused, ((0, 0), (0, cols_store - cols)))
        stat_const = jnp.pad(stat_const, ((0, 0), (0, cols_store - cols)))

    # Time-major flatten: row index = t*batch + b. Transposing the *narrow* input
    # (F_dyn floats/row) is the only XLA glue; the reshape is a free dim collapse.
    x_flat = jnp.transpose(x_d, (1, 0, 2)).reshape(seq * batch, fdyn)

    # ---- padded-aware VMEM accounting (lane padding + double buffering) ----------
    vmem_phys, num_cores = _tpu_vmem_and_cores()
    lanes_in = _lane_pad(fdyn)
    lanes_out = _lane_pad(cols_store)
    lanes_h1 = _lane_pad(h1d)
    # streamed bytes/row: in + out blocks double-buffered, plus f32 intermediates
    stream_bpr = 4 * (2 * lanes_in + 2 * lanes_out + lanes_h1 + lanes_out)
    const_bytes = sum(
        _const_buf_bytes(a.shape, buffers=2)          # conservative: assume 2 bufs
        for a in (stat_const, w1d, b1d, w2_fused)
    )
    budget = max(stream_bpr * batch,
                 min(vmem_phys // 3, 32 * 2**20) - const_bytes)

    if seq_tile is None:
        seq_tile = _pick_seq_tile(seq, batch, stream_bpr, budget, num_cores)
    assert seq % seq_tile == 0, (seq, seq_tile)
    row_tile = batch * seq_tile
    grid = (seq * batch // row_tile,)

    footprint = const_bytes + stream_bpr * row_tile
    vmem_limit = int(min(vmem_phys * 9 // 10, max(2 * footprint, 32 * 2**20)))

    out = pl.pallas_call(
        _input_layer_kernel,
        out_shape=jax.ShapeDtypeStruct((seq * batch, cols_store), out_dtype),
        grid_spec=pltpu.PrefetchScalarGridSpec(
            num_scalar_prefetch=0,
            grid=grid,
            in_specs=[
                pl.BlockSpec((row_tile, fdyn), lambda i: (i, 0)),   # streamed rows
                _const_spec(stat_const.shape),                      # statics + biases
                _const_spec(w1d.shape),                             # dyn hidden W
                _const_spec(b1d.shape),                             # dyn hidden b
                _const_spec(w2_fused.shape),                        # dyn out W (padded)
            ],
            out_specs=pl.BlockSpec((row_tile, cols_store), lambda i: (i, 0)),
        ),
        compiler_params=pltpu.CompilerParams(
            dimension_semantics=("parallel",),
            vmem_limit_bytes=vmem_limit,
        ),
    )(x_flat, stat_const, w1d, b1d, w2_fused)

    if cols_store > cols:
        out = out[:, :cols]
    out = out.reshape(seq, batch, cols)                 # free leading-dim split

    if concatenate_output:
        return out
    return out, y_s


# ----------------------------------------------------------------------------- test

def _init_fc2(key, fin, h1, h2, dtype=jnp.float32):
    k1, k2 = jax.random.split(key)
    w1 = jax.random.normal(k1, (fin, h1), dtype) * (1.0 / jnp.sqrt(fin))
    b1 = jnp.zeros((1, h1), dtype)
    w2 = jax.random.normal(k2, (h1, h2), dtype) * (1.0 / jnp.sqrt(h1))
    b2 = jnp.zeros((1, h2), dtype)
    return (w1, b1, w2, b2)


def _fc2_ref(x, w1, b1, w2, b2):
    return jnp.tanh(x @ w1 + b1) @ w2 + b2


if __name__ == "__main__":
    key = jax.random.PRNGKey(0)
    k_xd, k_xs, k_dyn, k_stat = jax.random.split(key, 4)

    batch, seq = 8, 16
    n_dyn_in, n_stat_in = 4, 6          # dynamic / static input feature counts
    dyn_hiddens = (32, 16)              # dynamics_embedding hiddens
    stat_hiddens = (32, 12)             # statics_embedding hiddens

    x_d = jax.random.normal(k_xd, (batch, seq, n_dyn_in), jnp.float32)
    x_s = jax.random.normal(k_xs, (batch, n_stat_in), jnp.float32)

    params = {
        "dyn": _init_fc2(k_dyn, n_dyn_in, *dyn_hiddens),
        "stat": _init_fc2(k_stat, n_stat_in, *stat_hiddens),
    }

    fwd = jax.jit(lambda xd, xs: input_layer_forward(xd, xs, params))
    out = jax.block_until_ready(fwd(x_d, x_s))

    # pure-JAX reference for correctness
    x_d_t = jnp.transpose(x_d, (1, 0, 2))
    dyn_ref = _fc2_ref(x_d_t.reshape(seq * batch, n_dyn_in), *params["dyn"]).reshape(
        seq, batch, -1
    )
    stat_ref = _fc2_ref(x_s, *params["stat"])
    ref = jnp.concatenate(
        [dyn_ref, jnp.broadcast_to(stat_ref[None], (seq,) + stat_ref.shape)], axis=-1
    )

    expected_shape = (seq, batch, dyn_hiddens[-1] + stat_hiddens[-1])
    assert out.shape == expected_shape, (out.shape, expected_shape)
    assert jnp.allclose(out, ref, atol=1e-5, rtol=1e-5)

    # concatenate_output=False path (dynamics-only kernel + XLA statics embedding)
    dyn_fn = jax.jit(
        lambda xd, xs: input_layer_forward(xd, xs, params, concatenate_output=False)
    )
    dyn_only, stat_only = jax.block_until_ready(dyn_fn(x_d, x_s))
    assert dyn_only.shape == (seq, batch, dyn_hiddens[-1])
    assert stat_only.shape == (batch, stat_hiddens[-1])
    assert jnp.allclose(dyn_only, dyn_ref, atol=1e-5, rtol=1e-5)
    assert jnp.allclose(stat_only, stat_ref, atol=1e-5, rtol=1e-5)

    print("KERNEL_OK")
</pallas_src>

<mosaic_0001>
module attributes {stable_mosaic.version = 11 : i64} {
  func.func @_input_layer_kernel(%arg0: i32, %arg1: memref<128x4xf32, #tpu.memory_space<vmem>>, %arg2: memref<8x28xf32, #tpu.memory_space<vmem>>, %arg3: memref<4x32xf32, #tpu.memory_space<vmem>>, %arg4: memref<1x32xf32, #tpu.memory_space<vmem>>, %arg5: memref<32x28xf32, #tpu.memory_space<vmem>>, %arg6: memref<128x28xf32, #tpu.memory_space<vmem>>) attributes {dimension_semantics = [#tpu.dimension_semantics<parallel>], iteration_bounds = array<i64: 1>, scalar_prefetch = 0 : i64, scratch_operands = 0 : i64, tpu.core_type = #tpu.core_type<tc>, window_params = [{transform_indices = @transform_0, window_bounds = array<i64: 128, 4>}, {pipeline_mode = #tpu.pipeline_mode<synchronous>, transform_indices = @transform_1, window_bounds = array<i64: 8, 28>}, {pipeline_mode = #tpu.pipeline_mode<synchronous>, transform_indices = @transform_2, window_bounds = array<i64: 4, 32>}, {pipeline_mode = #tpu.pipeline_mode<synchronous>, transform_indices = @transform_3, window_bounds = array<i64: 1, 32>}, {pipeline_mode = #tpu.pipeline_mode<synchronous>, transform_indices = @transform_4, window_bounds = array<i64: 32, 28>}, {transform_indices = @transform_5, window_bounds = array<i64: 128, 28>}]} {
    %c0 = arith.constant 0 : index
    %c0_0 = arith.constant 0 : index
    %0 = vector.load %arg1[%c0, %c0_0] : memref<128x4xf32, #tpu.memory_space<vmem>>, vector<128x4xf32>
    %c0_1 = arith.constant 0 : index
    %c0_2 = arith.constant 0 : index
    %1 = vector.load %arg3[%c0_1, %c0_2] : memref<4x32xf32, #tpu.memory_space<vmem>>, vector<4x32xf32>
    %cst = arith.constant dense<0.000000e+00> : vector<128x32xf32>
    %2 = tpu.matmul %0, %1, %cst {dimension_numbers = #tpu.dot_dimension_numbers<[1], [0], [0], [1], [0, 0, 1, 1], [], []>} : vector<128x4xf32>, vector<4x32xf32>, vector<128x32xf32> -> vector<128x32xf32>
    %c0_3 = arith.constant 0 : index
    %c0_4 = arith.constant 0 : index
    %3 = vector.load %arg4[%c0_3, %c0_4] : memref<1x32xf32, #tpu.memory_space<vmem>>, vector<1x32xf32>
    %4 = vector.broadcast %3 : vector<1x32xf32> to vector<128x32xf32>
    %5 = arith.addf %2, %4 : vector<128x32xf32>
    %6 = math.tanh %5 : vector<128x32xf32>
    %c0_5 = arith.constant 0 : index
    %c0_6 = arith.constant 0 : index
    %7 = vector.load %arg5[%c0_5, %c0_6] : memref<32x28xf32, #tpu.memory_space<vmem>>, vector<32x28xf32>
    %cst_7 = arith.constant dense<0.000000e+00> : vector<128x28xf32>
    %8 = tpu.matmul %6, %7, %cst_7 {dimension_numbers = #tpu.dot_dimension_numbers<[1], [0], [0], [1], [0, 0, 1, 1], [], []>} : vector<128x32xf32>, vector<32x28xf32>, vector<128x28xf32> -> vector<128x28xf32>
    %c0_8 = arith.constant 0 : index
    %c0_9 = arith.constant 0 : index
    %9 = vector.load %arg2[%c0_8, %c0_9] : memref<8x28xf32, #tpu.memory_space<vmem>>, vector<8x28xf32>
    %10 = vector.shape_cast %8 : vector<128x28xf32> to vector<16x8x28xf32>
    %11 = vector.shape_cast %9 : vector<8x28xf32> to vector<1x8x28xf32>
    %12 = vector.broadcast %11 : vector<1x8x28xf32> to vector<16x8x28xf32>
    %13 = arith.addf %10, %12 : vector<16x8x28xf32>
    %14 = vector.shape_cast %13 : vector<16x8x28xf32> to vector<128x28xf32>
    %c0_10 = arith.constant 0 : index
    %c0_11 = arith.constant 0 : index
    %15 = vector.load %arg6[%c0_10, %c0_11] : memref<128x28xf32, #tpu.memory_space<vmem>>, vector<128x28xf32>
    tpu.vector_store %arg6[%c0_10, %c0_11], %14 {strides = array<i32>} : memref<128x28xf32, #tpu.memory_space<vmem>>, vector<128x28xf32>,
    return
  }
  func.func @transform_0(%arg0: i32) -> (i32, i32) {
    %c0_i32 = arith.constant 0 : i32
    %c0_i32_0 = arith.constant 0 : i32
    return %arg0, %c0_i32 : i32, i32
  }
  func.func @transform_1(%arg0: i32) -> (i32, i32) {
    %c0_i32 = arith.constant 0 : i32
    %c0_i32_0 = arith.constant 0 : i32
    %c0_i32_1 = arith.constant 0 : i32
    return %c0_i32, %c0_i32_0 : i32, i32
  }
  func.func @transform_2(%arg0: i32) -> (i32, i32) {
    %c0_i32 = arith.constant 0 : i32
    %c0_i32_0 = arith.constant 0 : i32
    %c0_i32_1 = arith.constant 0 : i32
    return %c0_i32, %c0_i32_0 : i32, i32
  }
  func.func @transform_3(%arg0: i32) -> (i32, i32) {
    %c0_i32 = arith.constant 0 : i32
    %c0_i32_0 = arith.constant 0 : i32
    %c0_i32_1 = arith.constant 0 : i32
    return %c0_i32, %c0_i32_0 : i32, i32
  }
  func.func @transform_4(%arg0: i32) -> (i32, i32) {
    %c0_i32 = arith.constant 0 : i32
    %c0_i32_0 = arith.constant 0 : i32
    %c0_i32_1 = arith.constant 0 : i32
    return %c0_i32, %c0_i32_0 : i32, i32
  }
  func.func @transform_5(%arg0: i32) -> (i32, i32) {
    %c0_i32 = arith.constant 0 : i32
    %c0_i32_0 = arith.constant 0 : i32
    return %arg0, %c0_i32 : i32, i32
  }
}

</mosaic_0001>

<llo_original>
// kernel: _lambda_.1
$region0: #{_lambda_.1}
  #allocation0 [shape = 'u32[]', space=smem, size = 0x4, offset = 0x4, fixed_abs, tag = 'smem constant byte address 0x4 - core index']
  #allocation1 [shape = 'u32[144,128]{1,0:T(1,128)}', space=vmem, size = 0x12000, scoped, tag = 'internal scratch']
  %s0 = inlined_call_operand.vmem [shape: f32[128,4], index: 0, kind: input, shape index: {}]
  %s1 = inlined_call_operand.vmem [shape: f32[8,28], index: 1, kind: input, shape index: {}]
  %s2 = inlined_call_operand.vmem [shape: f32[4,32], index: 2, kind: input, shape index: {}]
  %s3 = inlined_call_operand.vmem [shape: f32[1,32], index: 3, kind: input, shape index: {}]
  %s4 = inlined_call_operand.vmem [shape: f32[32,28], index: 4, kind: input, shape index: {}]
  %s5 = inlined_call_operand.hbm [shape: f32[128,28], index: 5, kind: output, shape index: {}]
  %s6 = sld [smem:[#allocation0]]
  $region30: #{_lambda_.1} parent=0
    _
  %s8 = ssub.s32 1, %s6
  %s9 = scalar_select 0, %s8, %s6
  $region1: #{_lambda_.1} parent=0
    #allocation2 [shape = 'u8[65536]{0}', space=vmem, size = 0x10000, scoped, tag = 'output window, operand 0, single buffered']
    #allocation3 [shape = 's32[1]{0}', space=sflag, size = 0x4, scoped, tag = 'scoped memory for _lambda_.1']
    %10 = vsyncpa [#allocation3], 0
    // Predicated region
    $region2: #{_lambda_.1} parent=1 // pred_check
      _
    $region3: #{_lambda_.1} parent=1 // pred_check_branch
      %12 = sbr.rel (0) target = $region5
    $region4: #{_lambda_.1} parent=1 // pred_region
      _
    $region5: #{_lambda_.1} parent=1 // pred_fallthru
      _
    // Predicated region
    $region6: #{_lambda_.1} parent=1 // pred_check
      _
    $region7: #{_lambda_.1} parent=1 // pred_check_branch
      %14 = sbr.rel (0) target = $region9
    $region8: #{_lambda_.1} parent=1 // pred_region
      _
    $region9: #{_lambda_.1} parent=1 // pred_fallthru
      _
    // Predicated region
    $region10: #{_lambda_.1} parent=1 // pred_check
      _
    $region11: #{_lambda_.1} parent=1 // pred_check_branch
      %16 = sbr.rel (0) target = $region13
    $region12: #{_lambda_.1} parent=1 // pred_region
      _
    $region13: #{_lambda_.1} parent=1 // pred_fallthru
      _
    // Predicated region
    $region14: #{_lambda_.1} parent=1 // pred_check
      _
    $region15: #{_lambda_.1} parent=1 // pred_check_branch
      %18 = sbr.rel (0) target = $region17
    $region16: #{_lambda_.1} parent=1 // pred_region
      _
    $region17: #{_lambda_.1} parent=1 // pred_fallthru
      _
    // Predicated region
    $region18: #{_lambda_.1} parent=1 // pred_check
      _
    $region19: #{_lambda_.1} parent=1 // pred_check_branch
      %20 = sbr.rel (0) target = $region21
    $region20: #{_lambda_.1} parent=1 // pred_region
      _
    $region21: #{_lambda_.1} parent=1 // pred_fallthru
      _
    %v21 = vld [vmem:[%s0] sm:$0xff]
    %v22 = vld [vmem:[%s0 + $0x8] sm:$0xff]
    %v23 = vld [vmem:[%s0 + $0x10] sm:$0xff]
    %v24 = vld [vmem:[%s0 + $0x18] sm:$0xff]
    %v25 = vld [vmem:[%s0 + $0x20] sm:$0xff]
    %v26 = vld [vmem:[%s0 + $0x28] sm:$0xff]
    %v27 = vld [vmem:[%s0 + $0x30] sm:$0xff]
    %v28 = vld [vmem:[%s0 + $0x38] sm:$0xff]
    %v29 = vld [vmem:[%s0 + $0x40] sm:$0xff]
    %v30 = vld [vmem:[%s0 + $0x48] sm:$0xff]
    %v31 = vld [vmem:[%s0 + $0x50] sm:$0xff]
    %v32 = vld [vmem:[%s0 + $0x58] sm:$0xff]
    %v33 = vld [vmem:[%s0 + $0x60] sm:$0xff]
    %v34 = vld [vmem:[%s0 + $0x68] sm:$0xff]
    %v35 = vld [vmem:[%s0 + $0x70] sm:$0xff]
    %v36 = vld [vmem:[%s0 + $0x78] sm:$0xff]
    %v37 = vld [vmem:[%s2] sm:$0xf]
    %v38 = vld [vmem:[%s3] sm:$0x1]
    %v40 = vlaneseq
    %v41 = vshrl.u32 %v40, 7
    %v42 = vsub.s32 0, %v41
    %v43 = vrot.slane %v38, %v42
    %vm45 = vcmask 31744
    %v47 = vsel %vm45, %v21, 0
    %v50 = vsel %vm45, %v22, 0
    %v53 = vsel %vm45, %v23, 0
    %v56 = vsel %vm45, %v24, 0
    %v59 = vsel %vm45, %v25, 0
    %v62 = vsel %vm45, %v26, 0
    %v65 = vsel %vm45, %v27, 0
    %v68 = vsel %vm45, %v28, 0
    %v71 = vsel %vm45, %v29, 0
    %v74 = vsel %vm45, %v30, 0
    %v77 = vsel %vm45, %v31, 0
    %v80 = vsel %vm45, %v32, 0
    %v83 = vsel %vm45, %v33, 0
    %v86 = vsel %vm45, %v34, 0
    %v89 = vsel %vm45, %v35, 0
    %v92 = vsel %vm45, %v36, 0
    %vm94 = vcmask 1043456
    %v96 = vsel %vm94, %v37, 0
    %98 = vmatprep.subr.mxu0 0.0
    %99 = vmatpush1.msra.mxu0 0.0
    %100 = vmatprep.subr.mxu0 0.0
    %101 = vmatpush1.msra.mxu0 0.0
    %102 = vmatprep.subr.mxu0 0.0
    %103 = vmatpush1.msra.mxu0 0.0
    %104 = vmatprep.subr.mxu0 0.0
    %105 = vmatpush1.msra.mxu0 0.0
    %106 = vmatprep.subr.mxu0 0.0
    %107 = vmatpush1.msra.mxu0 0.0
    %108 = vmatprep.subr.mxu0 0.0
    %109 = vmatpush1.msra.mxu0 0.0
    %110 = vmatprep.subr.mxu0 0.0
    %111 = vmatpush1.msra.mxu0 0.0
    %112 = vmatprep.subr.mxu0 0.0
    %113 = vmatpush1.msra.mxu0 0.0
    %114 = vmatprep.subr.mxu0 0.0
    %115 = vmatpush1.msra.mxu0 0.0
    %116 = vmatprep.subr.mxu0 0.0
    %117 = vmatpush1.msra.mxu0 0.0
    %118 = vmatprep.subr.mxu0 0.0
    %119 = vmatpush1.msra.mxu0 0.0
    %120 = vmatprep.subr.mxu0 0.0
    %121 = vmatpush1.msra.mxu0 0.0
    %122 = vmatprep.subr.mxu0 0.0
    %123 = vmatpush1.msra.mxu0 0.0
    %124 = vmatprep.subr.mxu0 0.0
    %125 = vmatpush1.msra.mxu0 0.0
    %126 = vmatprep.subr.mxu0 0.0
    %127 = vmatpush1.msra.mxu0 0.0
    %128 = vmatprep.subr.mxu0 0.0
    %129 = vmatpush1.msra.mxu0 %v96
    %130 = vmatprep.subr.mxu0 0.0
    %131 = vmatpush2.msra.mxu0 0.0
    %132 = vmatprep.subr.mxu0 0.0
    %133 = vmatpush2.msra.mxu0 0.0
    %134 = vmatprep.subr.mxu0 0.0
    %135 = vmatpush2.msra.mxu0 0.0
    %136 = vmatprep.subr.mxu0 0.0
    %137 = vmatpush2.msra.mxu0 0.0
    %138 = vmatprep.subr.mxu0 0.0
    %139 = vmatpush2.msra.mxu0 0.0
    %140 = vmatprep.subr.mxu0 0.0
    %141 = vmatpush2.msra.mxu0 0.0
    %142 = vmatprep.subr.mxu0 0.0
    %143 = vmatpush2.msra.mxu0 0.0
    %144 = vmatprep.subr.mxu0 0.0
    %145 = vmatpush2.msra.mxu0 0.0
    %146 = vmatprep.subr.mxu0 0.0
    %147 = vmatpush2.msra.mxu0 0.0
    %148 = vmatprep.subr.mxu0 0.0
    %149 = vmatpush2.msra.mxu0 0.0
    %150 = vmatprep.subr.mxu0 0.0
    %151 = vmatpush2.msra.mxu0 0.0
    %152 = vmatprep.subr.mxu0 0.0
    %153 = vmatpush2.msra.mxu0 0.0
    %154 = vmatprep.subr.mxu0 0.0
    %155 = vmatpush2.msra.mxu0 0.0
    %156 = vmatprep.subr.mxu0 0.0
    %157 = vmatpush2.msra.mxu0 0.0
    %158 = vmatprep.subr.mxu0 0.0
    %159 = vmatpush2.msra.mxu0 0.0
    %160 = vmatprep.subr.mxu0 0.0
    %161 = vmatpush2.msra.mxu0 0.0
    %162 = vmatprep.mubr.f32.mxu0 0.0
    %163 = vmatmul.mubr.f32.gmra.mxu0 %v47
    %v164 = vpop.f32.mrf.mxu0
    %v165 = vadd.f32 %v43, %v164
    %v166 = vpop.f32.mrf.mxu0
    %167 = vmatprep.mubr.f32.mxu0 0.0
    %168 = vmatmul.mubr.f32.gmra.mxu0 %v50
    %v169 = vpop.f32.mrf.mxu0
    %v170 = vadd.f32 %v43, %v169
    %v171 = vpop.f32.mrf.mxu0
    %172 = vmatprep.mubr.f32.mxu0 0.0
    %173 = vmatmul.mubr.f32.gmra.mxu0 %v53
    %v174 = vpop.f32.mrf.mxu0
    %v175 = vadd.f32 %v43, %v174
    %v176 = vpop.f32.mrf.mxu0
    %177 = vmatprep.mubr.f32.mxu0 0.0
    %178 = vmatmul.mubr.f32.gmra.mxu0 %v56
    %v179 = vpop.f32.mrf.mxu0
    %v180 = vadd.f32 %v43, %v179
    %v181 = vpop.f32.mrf.mxu0
    %182 = vmatprep.mubr.f32.mxu0 0.0
    %183 = vmatmul.mubr.f32.gmra.mxu0 %v59
    %v184 = vpop.f32.mrf.mxu0
    %v185 = vadd.f32 %v43, %v184
    %v186 = vpop.f32.mrf.mxu0
    %187 = vmatprep.mubr.f32.mxu0 0.0
    %188 = vmatmul.mubr.f32.gmra.mxu0 %v62
    %v189 = vpop.f32.mrf.mxu0
    %v190 = vadd.f32 %v43, %v189
    %v191 = vpop.f32.mrf.mxu0
    %192 = vmatprep.mubr.f32.mxu0 0.0
    %193 = vmatmul.mubr.f32.gmra.mxu0 %v65
    %v194 = vpop.f32.mrf.mxu0
    %v195 = vadd.f32 %v43, %v194
    %v196 = vpop.f32.mrf.mxu0
    %197 = vmatprep.mubr.f32.mxu0 0.0
    %198 = vmatmul.mubr.f32.gmra.mxu0 %v68
    %v199 = vpop.f32.mrf.mxu0
    %v200 = vadd.f32 %v43, %v199
    %v201 = vpop.f32.mrf.mxu0
    %202 = vmatprep.mubr.f32.mxu0 0.0
    %203 = vmatmul.mubr.f32.gmra.mxu0 %v71
    %v204 = vpop.f32.mrf.mxu0
    %v205 = vadd.f32 %v43, %v204
    %v206 = vpop.f32.mrf.mxu0
    %207 = vmatprep.mubr.f32.mxu0 0.0
    %208 = vmatmul.mubr.f32.gmra.mxu0 %v74
    %v209 = vpop.f32.mrf.mxu0
    %v210 = vadd.f32 %v43, %v209
    %v211 = vpop.f32.mrf.mxu0
    %212 = vmatprep.mubr.f32.mxu0 0.0
    %213 = vmatmul.mubr.f32.gmra.mxu0 %v77
    %v214 = vpop.f32.mrf.mxu0
    %v215 = vadd.f32 %v43, %v214
    %v216 = vpop.f32.mrf.mxu0
    %217 = vmatprep.mubr.f32.mxu0 0.0
    %218 = vmatmul.mubr.f32.gmra.mxu0 %v80
    %v219 = vpop.f32.mrf.mxu0
    %v220 = vadd.f32 %v43, %v219
    %v221 = vpop.f32.mrf.mxu0
    %222 = vmatprep.mubr.f32.mxu0 0.0
    %223 = vmatmul.mubr.f32.gmra.mxu0 %v83
    %v224 = vpop.f32.mrf.mxu0
    %v225 = vadd.f32 %v43, %v224
    %v226 = vpop.f32.mrf.mxu0
    %227 = vmatprep.mubr.f32.mxu0 0.0
    %228 = vmatmul.mubr.f32.gmra.mxu0 %v86
    %v229 = vpop.f32.mrf.mxu0
    %v230 = vadd.f32 %v43, %v229
    %v231 = vpop.f32.mrf.mxu0
    %232 = vmatprep.mubr.f32.mxu0 0.0
    %233 = vmatmul.mubr.f32.gmra.mxu0 %v89
    %v234 = vpop.f32.mrf.mxu0
    %v235 = vadd.f32 %v43, %v234
    %v236 = vpop.f32.mrf.mxu0
    %237 = vmatprep.mubr.f32.mxu0 0.0
    %238 = vmatmul.mubr.f32.gmra.mxu0 %v92
    %v239 = vpop.f32.mrf.mxu0
    %v240 = vadd.f32 %v43, %v239
    %v241 = vpop.f32.mrf.mxu0
    %242 = vdwg.mxu0
    %v243 = vtanh.pop %v165
    %v244 = vtanh.pop %v170
    %v245 = vtanh.pop %v175
    %v246 = vtanh.pop %v180
    %v247 = vtanh.pop %v185
    %v248 = vtanh.pop %v190
    %v249 = vtanh.pop %v195
    %v250 = vtanh.pop %v200
    %v251 = vtanh.pop %v205
    %v252 = vtanh.pop %v210
    %v253 = vtanh.pop %v215
    %v254 = vtanh.pop %v220
    %v255 = vtanh.pop %v225
    %v256 = vtanh.pop %v230
    %v257 = vtanh.pop %v235
    %v258 = vtanh.pop %v240
    %v259 = vld [vmem:[%s4] sm:$0xff]
    %v260 = vld [vmem:[%s4 + $0x8] sm:$0xff]
    %v261 = vld [vmem:[%s4 + $0x10] sm:$0xff]
    %v262 = vld [vmem:[%s4 + $0x18] sm:$0xff]
    %vm263 = vcmask 261120
    %v265 = vsel %vm263, %v243, 0
    %v268 = vsel %vm263, %v244, 0
    %v271 = vsel %vm263, %v245, 0
    %v274 = vsel %vm263, %v246, 0
    %v277 = vsel %vm263, %v247, 0
    %v280 = vsel %vm263, %v248, 0
    %v283 = vsel %vm263, %v249, 0
    %v286 = vsel %vm263, %v250, 0
    %v289 = vsel %vm263, %v251, 0
    %v292 = vsel %vm263, %v252, 0
    %v295 = vsel %vm263, %v253, 0
    %v298 = vsel %vm263, %v254, 0
    %v301 = vsel %vm263, %v255, 0
    %v304 = vsel %vm263, %v256, 0
    %v307 = vsel %vm263, %v257, 0
    %v310 = vsel %vm263, %v258, 0
    %312 = vmatprep.subr.mxu0 0.0
    %313 = vmatpush1.msra.mxu0 0.0
    %314 = vmatprep.subr.mxu0 0.0
    %315 = vmatpush1.msra.mxu0 0.0
    %316 = vmatprep.subr.mxu0 0.0
    %317 = vmatpush1.msra.mxu0 0.0
    %318 = vmatprep.subr.mxu0 0.0
    %319 = vmatpush1.msra.mxu0 0.0
    %320 = vmatprep.subr.mxu0 0.0
    %321 = vmatpush1.msra.mxu0 0.0
    %322 = vmatprep.subr.mxu0 0.0
    %323 = vmatpush1.msra.mxu0 0.0
    %324 = vmatprep.subr.mxu0 0.0
    %325 = vmatpush1.msra.mxu0 0.0
    %326 = vmatprep.subr.mxu0 0.0
    %327 = vmatpush1.msra.mxu0 0.0
    %328 = vmatprep.subr.mxu0 0.0
    %329 = vmatpush1.msra.mxu0 0.0
    %330 = vmatprep.subr.mxu0 0.0
    %331 = vmatpush1.msra.mxu0 0.0
    %332 = vmatprep.subr.mxu0 0.0
    %333 = vmatpush1.msra.mxu0 0.0
    %334 = vmatprep.subr.mxu0 0.0
    %335 = vmatpush1.msra.mxu0 0.0
    %336 = vmatprep.subr.mxu0 0.0
    %337 = vmatpush1.msra.mxu0 %v262
    %338 = vmatprep.subr.mxu0 0.0
    %339 = vmatpush1.msra.mxu0 %v261
    %340 = vmatprep.subr.mxu0 0.0
    %341 = vmatpush1.msra.mxu0 %v260
    %342 = vmatprep.subr.mxu0 0.0
    %343 = vmatpush1.msra.mxu0 %v259
    %344 = vmatprep.subr.mxu0 0.0
    %345 = vmatpush2.msra.mxu0 0.0
    %346 = vmatprep.subr.mxu0 0.0
    %347 = vmatpush2.msra.mxu0 0.0
    %348 = vmatprep.subr.mxu0 0.0
    %349 = vmatpush2.msra.mxu0 0.0
    %350 = vmatprep.subr.mxu0 0.0
    %351 = vmatpush2.msra.mxu0 0.0
    %352 = vmatprep.subr.mxu0 0.0
    %353 = vmatpush2.msra.mxu0 0.0
    %354 = vmatprep.subr.mxu0 0.0
    %355 = vmatpush2.msra.mxu0 0.0
    %356 = vmatprep.subr.mxu0 0.0
    %357 = vmatpush2.msra.mxu0 0.0
    %358 = vmatprep.subr.mxu0 0.0
    %359 = vmatpush2.msra.mxu0 0.0
    %360 = vmatprep.subr.mxu0 0.0
    %361 = vmatpush2.msra.mxu0 0.0
    %362 = vmatprep.subr.mxu0 0.0
    %363 = vmatpush2.msra.mxu0 0.0
    %364 = vmatprep.subr.mxu0 0.0
    %365 = vmatpush2.msra.mxu0 0.0
    %366 = vmatprep.subr.mxu0 0.0
    %367 = vmatpush2.msra.mxu0 0.0
    %368 = vmatprep.subr.mxu0 0.0
    %369 = vmatpush2.msra.mxu0 0.0
    %370 = vmatprep.subr.mxu0 0.0
    %371 = vmatpush2.msra.mxu0 0.0
    %372 = vmatprep.subr.mxu0 0.0
    %373 = vmatpush2.msra.mxu0 0.0
    %374 = vmatprep.subr.mxu0 0.0
    %375 = vmatpush2.msra.mxu0 0.0
    %376 = vmatprep.mubr.f32.mxu0 0.0
    %377 = vmatmul.mubr.f32.gmra.mxu0 %v265
    %v378 = vpop.f32.mrf.mxu0
    %v379 = vadd.f32 0.0, %v378
    %v380 = vpop.f32.mrf.mxu0
    %381 = vmatprep.mubr.f32.mxu0 0.0
    %382 = vmatmul.mubr.f32.gmra.mxu0 %v268
    %v383 = vpop.f32.mrf.mxu0
    %v384 = vadd.f32 0.0, %v383
    %v385 = vpop.f32.mrf.mxu0
    %386 = vmatprep.mubr.f32.mxu0 0.0
    %387 = vmatmul.mubr.f32.gmra.mxu0 %v271
    %v388 = vpop.f32.mrf.mxu0
    %v389 = vadd.f32 0.0, %v388
    %v390 = vpop.f32.mrf.mxu0
    %391 = vmatprep.mubr.f32.mxu0 0.0
    %392 = vmatmul.mubr.f32.gmra.mxu0 %v274
    %v393 = vpop.f32.mrf.mxu0
    %v394 = vadd.f32 0.0, %v393
    %v395 = vpop.f32.mrf.mxu0
    %396 = vmatprep.mubr.f32.mxu0 0.0
    %397 = vmatmul.mubr.f32.gmra.mxu0 %v277
    %v398 = vpop.f32.mrf.mxu0
    %v399 = vadd.f32 0.0, %v398
    %v400 = vpop.f32.mrf.mxu0
    %401 = vmatprep.mubr.f32.mxu0 0.0
    %402 = vmatmul.mubr.f32.gmra.mxu0 %v280
    %v403 = vpop.f32.mrf.mxu0
    %v404 = vadd.f32 0.0, %v403
    %v405 = vpop.f32.mrf.mxu0
    %406 = vmatprep.mubr.f32.mxu0 0.0
    %407 = vmatmul.mubr.f32.gmra.mxu0 %v283
    %v408 = vpop.f32.mrf.mxu0
    %v409 = vadd.f32 0.0, %v408
    %v410 = vpop.f32.mrf.mxu0
    %411 = vmatprep.mubr.f32.mxu0 0.0
    %412 = vmatmul.mubr.f32.gmra.mxu0 %v286
    %v413 = vpop.f32.mrf.mxu0
    %v414 = vadd.f32 0.0, %v413
    %v415 = vpop.f32.mrf.mxu0
    %416 = vmatprep.mubr.f32.mxu0 0.0
    %417 = vmatmul.mubr.f32.gmra.mxu0 %v289
    %v418 = vpop.f32.mrf.mxu0
    %v419 = vadd.f32 0.0, %v418
    %v420 = vpop.f32.mrf.mxu0
    %421 = vmatprep.mubr.f32.mxu0 0.0
    %422 = vmatmul.mubr.f32.gmra.mxu0 %v292
    %v423 = vpop.f32.mrf.mxu0
    %v424 = vadd.f32 0.0, %v423
    %v425 = vpop.f32.mrf.mxu0
    %426 = vmatprep.mubr.f32.mxu0 0.0
    %427 = vmatmul.mubr.f32.gmra.mxu0 %v295
    %v428 = vpop.f32.mrf.mxu0
    %v429 = vadd.f32 0.0, %v428
    %v430 = vpop.f32.mrf.mxu0
    %431 = vmatprep.mubr.f32.mxu0 0.0
    %432 = vmatmul.mubr.f32.gmra.mxu0 %v298
    %v433 = vpop.f32.mrf.mxu0
    %v434 = vadd.f32 0.0, %v433
    %v435 = vpop.f32.mrf.mxu0
    %436 = vmatprep.mubr.f32.mxu0 0.0
    %437 = vmatmul.mubr.f32.gmra.mxu0 %v301
    %v438 = vpop.f32.mrf.mxu0
    %v439 = vadd.f32 0.0, %v438
    %v440 = vpop.f32.mrf.mxu0
    %441 = vmatprep.mubr.f32.mxu0 0.0
    %442 = vmatmul.mubr.f32.gmra.mxu0 %v304
    %v443 = vpop.f32.mrf.mxu0
    %v444 = vadd.f32 0.0, %v443
    %v445 = vpop.f32.mrf.mxu0
    %446 = vmatprep.mubr.f32.mxu0 0.0
    %447 = vmatmul.mubr.f32.gmra.mxu0 %v307
    %v448 = vpop.f32.mrf.mxu0
    %v449 = vadd.f32 0.0, %v448
    %v450 = vpop.f32.mrf.mxu0
    %451 = vmatprep.mubr.f32.mxu0 0.0
    %452 = vmatmul.mubr.f32.gmra.mxu0 %v310
    %v453 = vpop.f32.mrf.mxu0
    %v454 = vadd.f32 0.0, %v453
    %v455 = vpop.f32.mrf.mxu0
    %456 = vdwg.mxu0
    %v457 = vld [vmem:[%s1] sm:$0xff]
    %v458 = vadd.f32 %v379, %v457
    %v459 = vadd.f32 %v384, %v457
    %v460 = vadd.f32 %v389, %v457
    %v461 = vadd.f32 %v394, %v457
    %v462 = vadd.f32 %v399, %v457
    %v463 = vadd.f32 %v404, %v457
    %v464 = vadd.f32 %v409, %v457
    %v465 = vadd.f32 %v414, %v457
    %v466 = vadd.f32 %v419, %v457
    %v467 = vadd.f32 %v424, %v457
    %v468 = vadd.f32 %v429, %v457
    %v469 = vadd.f32 %v434, %v457
    %v470 = vadd.f32 %v439, %v457
    %v471 = vadd.f32 %v444, %v457
    %v472 = vadd.f32 %v449, %v457
    %v473 = vadd.f32 %v454, %v457
    %vm474 = vcmask 228352
    %475 = vst.msk [vmem:[#allocation2] sm:$0xff] %vm474, %v458
    %476 = vst.msk [vmem:[#allocation2 + $0x8] sm:$0xff] %vm474, %v459
    %477 = vst.msk [vmem:[#allocation2 + $0x10] sm:$0xff] %vm474, %v460
    %478 = vst.msk [vmem:[#allocation2 + $0x18] sm:$0xff] %vm474, %v461
    %479 = vst.msk [vmem:[#allocation2 + $0x20] sm:$0xff] %vm474, %v462
    %480 = vst.msk [vmem:[#allocation2 + $0x28] sm:$0xff] %vm474, %v463
    %481 = vst.msk [vmem:[#allocation2 + $0x30] sm:$0xff] %vm474, %v464
    %482 = vst.msk [vmem:[#allocation2 + $0x38] sm:$0xff] %vm474, %v465
    %483 = vst.msk [vmem:[#allocation2 + $0x40] sm:$0xff] %vm474, %v466
    %484 = vst.msk [vmem:[#allocation2 + $0x48] sm:$0xff] %vm474, %v467
    %485 = vst.msk [vmem:[#allocation2 + $0x50] sm:$0xff] %vm474, %v468
    %486 = vst.msk [vmem:[#allocation2 + $0x58] sm:$0xff] %vm474, %v469
    %487 = vst.msk [vmem:[#allocation2 + $0x60] sm:$0xff] %vm474, %v470
    %488 = vst.msk [vmem:[#allocation2 + $0x68] sm:$0xff] %vm474, %v471
    %489 = vst.msk [vmem:[#allocation2 + $0x70] sm:$0xff] %vm474, %v472
    %490 = vst.msk [vmem:[#allocation2 + $0x78] sm:$0xff] %vm474, %v473
    // Predicated region
    $region22: #{_lambda_.1} parent=1 // pred_check
      _
    $region23: #{_lambda_.1} parent=1 // pred_check_branch
      %492 = sbr.rel (0) target = $region25
    $region24: #{_lambda_.1} parent=1 // pred_region
      %s494 = ssub.s32 2048, 2048
      %495 = vsyncadd [#allocation3], %s494
      %s496 = sshll.u32 [#allocation2], 4
      %s497 = int_to_ptr.vmem [resolvable:$true] %s496
      %502 = dma.vmem_to_hbm [thread:$0]  %s497, 2048, %s5, [#allocation3], 128, 128, 8
    $region25: #{_lambda_.1} parent=1 // pred_fallthru
      _
    // Predicated region
    $region26: #{_lambda_.1} parent=1 // pred_check
      _
    $region27: #{_lambda_.1} parent=1 // pred_check_branch
      %504 = sbr.rel (0) target = $region29
    $region28: #{_lambda_.1} parent=1 // pred_region
      %505 = dma.done [#allocation3], 2048
    $region29: #{_lambda_.1} parent=1 // pred_fallthru
      _
    %506 = vsyncpa [#allocation3], 1

</llo_original>
